<compile_context>
chip_gen: v7x
topology: tpu7x:2x2x1
jax: 0.10.0
libtpu: 0.0.40
codegen_flags: <defaults>
</compile_context>

<pallas_src>
import functools

import jax
import jax.numpy as jnp
from jax.experimental import pallas as pl
from jax.experimental.pallas import tpu as pltpu


def _round_up(x, m):
    return ((x + m - 1) // m) * m


def _tpu_vmem_bytes():
    try:
        return int(pltpu.get_tpu_info().vmem_capacity_bytes)
    except Exception:
        return 64 << 20  # conservative fallback (v7x-sized)


# ----------------------------------------------------------------------------
# Single-pass kernel (full feature axis resident per row tile)
# ----------------------------------------------------------------------------
def _rmsnorm_kernel(x_ref, w_ref, o_ref, *, eps, inv_d, low_precision):
    # x_ref: (row_block, d_pad), w_ref: (1, d_pad), o_ref: (row_block, d_pad)
    # Padded lanes (if any) are zero in x and w, and the divisor is the
    # ORIGINAL d, so the mean over the real feature axis is exact.
    xv = x_ref[...]
    xf = xv.astype(jnp.float32)
    ss = jnp.sum(xf * xf, axis=-1, keepdims=True)            # (rb, 1) f32
    inv = jax.lax.rsqrt(ss * inv_d + eps)                    # EUP rsqrt
    if low_precision:
        # 16-bit path: skip the full f32 product tile (saves ~4 B/elem VMEM).
        # (On v5e Mosaic widens bf16 VALU ops internally; still correct.)
        o_ref[...] = ((xv * inv.astype(xv.dtype))
                      * w_ref[...].astype(xv.dtype)).astype(o_ref.dtype)
    else:
        o_ref[...] = (xf * inv * w_ref[...].astype(jnp.float32)).astype(o_ref.dtype)


# ----------------------------------------------------------------------------
# Two-pass kernels for very large d (d-tiled)
# ----------------------------------------------------------------------------
def _ssq_kernel(x_ref, ss_ref):
    # Accumulate per-row sum of squares across d tiles in the resident output
    # block (same block index along the trailing "arbitrary" d axis).
    @pl.when(pl.program_id(1) == 0)
    def _():
        ss_ref[...] = jnp.zeros_like(ss_ref)

    xf = x_ref[...].astype(jnp.float32)
    ss_ref[...] += jnp.sum(xf * xf, axis=-1, keepdims=True)


def _scale_kernel(x_ref, ss_ref, w_ref, o_ref, *, eps, inv_d, low_precision):
    inv = jax.lax.rsqrt(ss_ref[...] * inv_d + eps)           # (rb, 1) f32
    xv = x_ref[...]
    if low_precision:
        o_ref[...] = ((xv * inv.astype(xv.dtype))
                      * w_ref[...].astype(xv.dtype)).astype(o_ref.dtype)
    else:
        o_ref[...] = (xv.astype(jnp.float32) * inv
                      * w_ref[...].astype(jnp.float32)).astype(o_ref.dtype)


# ----------------------------------------------------------------------------
# Tile-size selection
# ----------------------------------------------------------------------------
def _choose_row_block(rows, d_pad, itemsize, pack, budget, target_tile_bytes,
                      multi_core, low_precision):
    """Rows per tile.  Returns None if even a pack-row full-d tile won't fit."""
    temps = 6 if low_precision else 8                 # f32 temp bytes / element
    per_row = d_pad * (4 * itemsize + temps)          # 2x in + 2x out + temps
    if pack * per_row > budget:
        return None                                   # -> two-pass d-tiled path

    # Rows from the input-tile-bytes target, clamped by the VMEM budget.
    rb = max(pack, target_tile_bytes // (d_pad * itemsize))
    rb = min(rb, budget // per_row)
    rb = max(pack, (rb // pack) * pack)

    if rb >= rows:
        # Whole problem in one block (block dim == full array dim: always legal).
        # On a 2-TC part, split a substantial single block into 2 even steps.
        if multi_core and rows >= 2 * pack and rows * d_pad * itemsize >= (2 << 20):
            half = _round_up(pl.cdiv(rows, 2), pack)
            return min(half, rows)
        return rows

    # v7x megacore: prefer an even step count so the two TCs stay balanced,
    # but never shrink the input tile below ~4 MiB to achieve it.
    if multi_core:
        nsteps = pl.cdiv(rows, rb)
        if nsteps % 2 == 1 and nsteps > 1:
            cand = _round_up(pl.cdiv(rows, nsteps + 1), pack)
            if cand * d_pad * itemsize >= (4 << 20):
                rb = min(cand, rows)
    return rb


def _two_pass_blocks(rows, d, itemsize, pack, budget):
    per_elem = 4 * itemsize + 8
    db = max(128, ((budget // (256 * per_elem)) // 128) * 128)
    db = min(db, _round_up(d, 128))
    rb = max(pack, ((budget // (db * per_elem)) // pack) * pack)
    rb = min(rb, _round_up(rows, pack))
    return rb, db


# ----------------------------------------------------------------------------
# Two-pass (large-d) driver
# ----------------------------------------------------------------------------
def _rmsnorm_two_pass(x2, weight, eps, rb, db, low_precision, vmem_cap_limit):
    rows, d = x2.shape
    orig_dtype = x2.dtype
    itemsize = jnp.dtype(orig_dtype).itemsize

    d_pad = _round_up(d, db)
    x2p = jnp.pad(x2, ((0, 0), (0, d_pad - d))) if d_pad != d else x2
    w2 = weight.reshape(1, d)
    if d_pad != d:
        w2 = jnp.pad(w2, ((0, 0), (0, d_pad - d)))

    rb = min(rb, rows)
    nr = pl.cdiv(rows, rb)
    nd = d_pad // db
    inv_d = 1.0 / float(d)

    vmem_limit = int(min(vmem_cap_limit,
                         max(16 << 20, rb * db * (4 * itemsize + 8) * 2)))

    # Pass 1: per-row sum of squares, accumulated across d tiles.
    ss = pl.pallas_call(
        _ssq_kernel,
        out_shape=jax.ShapeDtypeStruct((rows, 1), jnp.float32),
        grid_spec=pltpu.PrefetchScalarGridSpec(
            num_scalar_prefetch=0,
            grid=(nr, nd),
            in_specs=[pl.BlockSpec((rb, db), lambda i, j: (i, j))],
            out_specs=pl.BlockSpec((rb, 1), lambda i, j: (i, 0)),
        ),
        compiler_params=pltpu.CompilerParams(
            dimension_semantics=("parallel", "arbitrary"),
            vmem_limit_bytes=vmem_limit,
        ),
    )(x2p)

    # Pass 2: scale each (row, d) tile.
    kernel = functools.partial(_scale_kernel, eps=float(eps), inv_d=inv_d,
                               low_precision=low_precision)
    out = pl.pallas_call(
        kernel,
        out_shape=jax.ShapeDtypeStruct((rows, d_pad), orig_dtype),
        grid_spec=pltpu.PrefetchScalarGridSpec(
            num_scalar_prefetch=0,
            grid=(nr, nd),
            in_specs=[pl.BlockSpec((rb, db), lambda i, j: (i, j)),
                      pl.BlockSpec((rb, 1), lambda i, j: (i, 0)),
                      pl.BlockSpec((1, db), lambda i, j: (0, j))],
            out_specs=pl.BlockSpec((rb, db), lambda i, j: (i, j)),
        ),
        compiler_params=pltpu.CompilerParams(
            dimension_semantics=("parallel", "parallel"),
            vmem_limit_bytes=vmem_limit,
        ),
    )(x2p, ss, w2)

    if d_pad != d:
        out = out[:, :d]
    return out


# ----------------------------------------------------------------------------
# Public entry point
# ----------------------------------------------------------------------------
def rmsnorm(x, weight, eps=1e-5, row_block=None):
    """RMSNorm over the last axis. x: (..., d), weight: (d,). Same shape/dtype out."""
    orig_shape = x.shape
    orig_dtype = x.dtype
    d = orig_shape[-1]
    x2 = x.reshape(-1, d)
    rows = x2.shape[0]

    itemsize = jnp.dtype(orig_dtype).itemsize
    # Sublane packing: 8 for 32-bit, 16 for bf16/f16, 32 for 8-bit dtypes.
    pack = {4: 8, 2: 16, 1: 32}.get(itemsize, 8)
    d_pad = _round_up(d, 128)                 # lane-dense loads / unmasked stores
    low_precision = itemsize == 2             # bf16/f16 output path

    # Generation-aware VMEM sizing.
    vmem_cap = _tpu_vmem_bytes()
    multi_core = vmem_cap < (100 << 20)       # v7x-like: 64 MiB/TC, 2 TCs/chip
    if multi_core:
        budget = 24 << 20                     # tile footprint budget
        target_tile = 6 << 20                 # preferred input tile bytes
        vmem_cap_limit = 40 << 20             # scoped-VMEM ceiling (64 MiB part)
    else:
        budget = 64 << 20                     # v5e/v6e: 128 MiB physical VMEM
        target_tile = 8 << 20
        vmem_cap_limit = 96 << 20

    if row_block is None:
        row_block = _choose_row_block(rows, d_pad, itemsize, pack, budget,
                                      target_tile, multi_core, low_precision)
    if row_block is None:
        # d too large for a single full-row tile: two-pass d-tiled fallback.
        rb, db = _two_pass_blocks(rows, d, itemsize, pack, budget)
        out = _rmsnorm_two_pass(x2, weight, eps, rb, db, low_precision,
                                vmem_cap_limit)
        return out.reshape(orig_shape)

    rb = int(row_block)

    # Lane padding ONLY (zeros; divisor stays the original d).  The row axis is
    # left unpadded; the last grid block may be partial (OOB rows are never
    # written back and rows are independent).
    x2p = jnp.pad(x2, ((0, 0), (0, d_pad - d))) if d_pad != d else x2
    w2 = weight.reshape(1, d)
    if d_pad != d:
        w2 = jnp.pad(w2, ((0, 0), (0, d_pad - d)))

    nsteps = pl.cdiv(rows, rb)
    grid = (nsteps,)

    temps = 6 if low_precision else 8
    tile_footprint = (rb * d_pad * (4 * itemsize + temps)
                      + 2 * d_pad * jnp.dtype(w2.dtype).itemsize)
    vmem_limit = int(min(vmem_cap_limit, max(16 << 20, tile_footprint * 3 // 2)))

    # Small-tile regime only: a third input buffer hides DMA issue latency.
    tile_bytes = rb * d_pad * itemsize
    if nsteps >= 4 and tile_bytes < (2 << 20):
        x_spec = pl.BlockSpec((rb, d_pad), lambda i: (i, 0),
                              pipeline_mode=pl.Buffered(3))
    else:
        x_spec = pl.BlockSpec((rb, d_pad), lambda i: (i, 0))

    cost = pl.CostEstimate(
        flops=3 * rows * d_pad,
        transcendentals=rows,
        bytes_accessed=2 * rows * d_pad * itemsize
        + d_pad * jnp.dtype(w2.dtype).itemsize,
    )

    kernel = functools.partial(_rmsnorm_kernel, eps=float(eps),
                               inv_d=1.0 / float(d), low_precision=low_precision)

    out = pl.pallas_call(
        kernel,
        out_shape=jax.ShapeDtypeStruct((rows, d_pad), orig_dtype),
        grid_spec=pltpu.PrefetchScalarGridSpec(
            num_scalar_prefetch=0,
            grid=grid,
            in_specs=[x_spec,
                      pl.BlockSpec((1, d_pad), lambda i: (0, 0))],   # weight, resident
            out_specs=pl.BlockSpec((rb, d_pad), lambda i: (i, 0)),
        ),
        compiler_params=pltpu.CompilerParams(
            dimension_semantics=("parallel",),
            vmem_limit_bytes=vmem_limit,
        ),
        cost_estimate=cost,
    )(x2p, w2)

    if d_pad != d:
        out = out[:, :d]
    return out.reshape(orig_shape)


def _ref_rmsnorm(x, weight, eps):
    xf = x.astype(jnp.float32)
    ms = jnp.mean(xf * xf, axis=-1, keepdims=True)
    return (xf * jax.lax.rsqrt(ms + eps) * weight.astype(jnp.float32)).astype(x.dtype)


if __name__ == "__main__":
    key = jax.random.PRNGKey(0)
    eps = 1e-5
    k1, k2, k3, k4, k5 = jax.random.split(key, 5)

    # Case 1: small shape implied by the module: (batch, seq, d) = (2, 8, 32),
    # weight = ones (matches nn.Parameter(torch.ones(d))). d=32 is lane-padded
    # to 128 inside the wrapper; rows are NOT padded.
    x = jax.random.normal(k1, (2, 8, 32), dtype=jnp.float32)
    w = jnp.ones((32,), dtype=jnp.float32)
    out = jax.block_until_ready(rmsnorm(x, w, eps=eps))
    ref = _ref_rmsnorm(x, w, eps)
    assert out.shape == x.shape and out.dtype == x.dtype
    assert jnp.allclose(out, ref, atol=2e-5, rtol=2e-5)

    # Case 2: awkward rows (3*5=15) and d not a multiple of 128, non-trivial
    # weight -> exercises the unpadded-row + lane-padding paths.
    x2 = jax.random.normal(k2, (3, 5, 160), dtype=jnp.float32)
    w2 = 1.0 + 0.1 * jax.random.normal(k3, (160,), dtype=jnp.float32)
    out2 = jax.block_until_ready(rmsnorm(x2, w2, eps=eps))
    ref2 = _ref_rmsnorm(x2, w2, eps)
    assert out2.shape == x2.shape and out2.dtype == x2.dtype
    assert jnp.allclose(out2, ref2, atol=2e-5, rtol=2e-5)

    # Case 3: bf16 input exercises the low-precision output path (f32 accum).
    xb = jax.random.normal(k4, (2, 8, 256), dtype=jnp.float32).astype(jnp.bfloat16)
    wb = (1.0 + 0.1 * jax.random.normal(k5, (256,), dtype=jnp.float32)).astype(jnp.bfloat16)
    outb = jax.block_until_ready(rmsnorm(xb, wb, eps=eps))
    refb = _ref_rmsnorm(xb, wb, eps)
    assert outb.shape == xb.shape and outb.dtype == jnp.bfloat16
    assert jnp.allclose(outb.astype(jnp.float32), refb.astype(jnp.float32),
                        atol=4e-2, rtol=4e-2)

    # Case 4: force the two-pass d-tiled fallback (auto-used only for very
    # large d) with tiny blocks to verify it end-to-end, incl. ragged rows
    # and lane padding (d=300 -> padded to 384, db=128).
    x4 = jax.random.normal(k1, (12, 300), dtype=jnp.float32)
    w4 = 1.0 + 0.05 * jax.random.normal(k2, (300,), dtype=jnp.float32)
    out4 = jax.block_until_ready(
        _rmsnorm_two_pass(x4, w4, eps, rb=8, db=128,
                          low_precision=False, vmem_cap_limit=64 << 20))
    ref4 = _ref_rmsnorm(x4, w4, eps)
    assert out4.shape == x4.shape and out4.dtype == x4.dtype
    assert jnp.allclose(out4, ref4, atol=2e-5, rtol=2e-5)

    print("KERNEL_OK")
</pallas_src>

<mosaic_0001>
module attributes {stable_mosaic.version = 11 : i64} {
  func.func @_rmsnorm_kernel(%arg0: i32, %arg1: memref<16x128xf32, #tpu.memory_space<vmem>>, %arg2: memref<1x128xf32, #tpu.memory_space<vmem>>, %arg3: memref<16x128xf32, #tpu.memory_space<vmem>>) attributes {dimension_semantics = [#tpu.dimension_semantics<parallel>], iteration_bounds = array<i64: 1>, scalar_prefetch = 0 : i64, scratch_operands = 0 : i64, tpu.core_type = #tpu.core_type<tc>, window_params = [{transform_indices = @transform_0, window_bounds = array<i64: 16, 128>}, {pipeline_mode = #tpu.pipeline_mode<synchronous>, transform_indices = @transform_1, window_bounds = array<i64: 1, 128>}, {transform_indices = @transform_2, window_bounds = array<i64: 16, 128>}]} {
    %c0 = arith.constant 0 : index
    %c0_0 = arith.constant 0 : index
    %0 = vector.load %arg1[%c0, %c0_0] : memref<16x128xf32, #tpu.memory_space<vmem>>, vector<16x128xf32>
    %1 = arith.mulf %0, %0 : vector<16x128xf32>
    %cst = arith.constant dense<0.000000e+00> : vector<16xf32>
    %2 = vector.multi_reduction <add>, %1, %cst [1] : vector<16x128xf32> to vector<16xf32>
    %3 = vector.shape_cast %2 : vector<16xf32> to vector<16x1xf32>
    %cst_1 = arith.constant 3.125000e-02 : f32
    %4 = vector.broadcast %cst_1 : f32 to vector<16x1xf32>
    %5 = arith.mulf %3, %4 : vector<16x1xf32>
    %cst_2 = arith.constant 9.99999974E-6 : f32
    %6 = vector.broadcast %cst_2 : f32 to vector<16x1xf32>
    %7 = arith.addf %5, %6 : vector<16x1xf32>
    %8 = math.rsqrt %7 : vector<16x1xf32>
    %9 = vector.broadcast %8 : vector<16x1xf32> to vector<16x128xf32>
    %10 = arith.mulf %0, %9 : vector<16x128xf32>
    %c0_3 = arith.constant 0 : index
    %c0_4 = arith.constant 0 : index
    %11 = vector.load %arg2[%c0_3, %c0_4] : memref<1x128xf32, #tpu.memory_space<vmem>>, vector<1x128xf32>
    %12 = vector.broadcast %11 : vector<1x128xf32> to vector<16x128xf32>
    %13 = arith.mulf %10, %12 : vector<16x128xf32>
    %c0_5 = arith.constant 0 : index
    %c0_6 = arith.constant 0 : index
    %14 = vector.load %arg3[%c0_5, %c0_6] : memref<16x128xf32, #tpu.memory_space<vmem>>, vector<16x128xf32>
    tpu.vector_store %arg3[%c0_5, %c0_6], %13 {strides = array<i32>} : memref<16x128xf32, #tpu.memory_space<vmem>>, vector<16x128xf32>,
    return
  }
  func.func @transform_0(%arg0: i32) -> (i32, i32) {
    %c0_i32 = arith.constant 0 : i32
    %c0_i32_0 = arith.constant 0 : i32
    return %arg0, %c0_i32 : i32, i32
  }
  func.func @transform_1(%arg0: i32) -> (i32, i32) {
    %c0_i32 = arith.constant 0 : i32
    %c0_i32_0 = arith.constant 0 : i32
    %c0_i32_1 = arith.constant 0 : i32
    return %c0_i32, %c0_i32_0 : i32, i32
  }
  func.func @transform_2(%arg0: i32) -> (i32, i32) {
    %c0_i32 = arith.constant 0 : i32
    %c0_i32_0 = arith.constant 0 : i32
    return %arg0, %c0_i32 : i32, i32
  }
}

</mosaic_0001>

<llo_original>
// kernel: tpu_custom_call.1
$region0: #{tpu_custom_call.1}
  #allocation0 [shape = 'u32[]', space=smem, size = 0x4, offset = 0x4, fixed_abs, tag = 'smem constant byte address 0x4 - core index']
  #allocation1 [shape = 'u32[144,128]{1,0:T(1,128)}', space=vmem, size = 0x12000, scoped, tag = 'internal scratch']
  %s0 = inlined_call_operand.hbm [shape: f32[16,128], index: 0, kind: input, shape index: {}]
  %s1 = inlined_call_operand.vmem [shape: f32[1,128], index: 1, kind: input, shape index: {}]
  %s2 = inlined_call_operand.hbm [shape: f32[16,128], index: 2, kind: output, shape index: {}]
  %s3 = sld [smem:[#allocation0]]
  $region22: #{tpu_custom_call.1} parent=0
    _
  %s5 = ssub.s32 1, %s3
  %s6 = scalar_select 0, %s5, %s3
  $region1: #{tpu_custom_call.1} parent=0
    #allocation2 [shape = 'u8[8192]{0}', space=vmem, size = 0x2000, scoped, tag = 'input window, operand 0, single buffered']
    #allocation3 [shape = 's32[1]{0}', space=sflag, size = 0x4, scoped, tag = 'scoped memory for tpu_custom_call.1']
    #allocation4 [shape = 's32[1]{0}', space=sflag, size = 0x4, scoped, tag = 'scoped memory for tpu_custom_call.1']
    #allocation5 [shape = 'u8[8192]{0}', space=vmem, size = 0x2000, scoped, tag = 'output window, operand 0, single buffered']
    %7 = vsyncpa [#allocation3], 0
    %8 = vsyncpa [#allocation4], 0
    // Predicated region
    $region2: #{tpu_custom_call.1} parent=1 // pred_check
      _
    $region3: #{tpu_custom_call.1} parent=1 // pred_check_branch
      %10 = sbr.rel (0) target = $region5
    $region4: #{tpu_custom_call.1} parent=1 // pred_region
      %s12 = ssub.s32 256, 256
      %13 = vsyncadd [#allocation3], %s12
      %s14 = sshll.u32 [#allocation2], 4
      %s15 = int_to_ptr.vmem [resolvable:$true] %s14
      %20 = dma.hbm_to_vmem [thread:$0]  %s0, 256, %s15, [#allocation3], 128, 128, 8
    $region5: #{tpu_custom_call.1} parent=1 // pred_fallthru
      _
    // Predicated region
    $region6: #{tpu_custom_call.1} parent=1 // pred_check
      _
    $region7: #{tpu_custom_call.1} parent=1 // pred_check_branch
      %22 = sbr.rel (0) target = $region9
    $region8: #{tpu_custom_call.1} parent=1 // pred_region
      _
    $region9: #{tpu_custom_call.1} parent=1 // pred_fallthru
      _
    // Predicated region
    $region10: #{tpu_custom_call.1} parent=1 // pred_check
      _
    $region11: #{tpu_custom_call.1} parent=1 // pred_check_branch
      %24 = sbr.rel (0) target = $region13
    $region12: #{tpu_custom_call.1} parent=1 // pred_region
      %25 = dma.done [#allocation3], 256
    $region13: #{tpu_custom_call.1} parent=1 // pred_fallthru
      _
    %v26 = vld [vmem:[#allocation2] sm:$0xff]
    %v27 = vld [vmem:[#allocation2 + $0x8] sm:$0xff]
    %v28 = vmul.f32 %v26, %v26
    %v29 = vmul.f32 %v27, %v27
    %30 = vadd.xlane.f32.xlu0 %v28
    %v31 = vpop.xlane.xlu0 %30
    %32 = vadd.xlane.f32.xlu0 %v29
    %v33 = vpop.xlane.xlu0 %32
    %v34 = vmul.f32 %v31, 0.03125
    %v35 = vmul.f32 %v33, 0.03125
    %v36 = vadd.f32 %v34, 1e-05
    %v37 = vadd.f32 %v35, 1e-05
    %v38 = vrsqrt.pop %v36
    %v39 = vrsqrt.pop %v37
    %v40 = vmul.f32 %v26, %v38
    %v41 = vmul.f32 %v27, %v39
    %v42 = vld [vmem:[%s1] sm:$0x1]
    %v44 = vlaneseq
    %v45 = vshrl.u32 %v44, 7
    %v46 = vsub.s32 0, %v45
    %v47 = vrot.slane %v42, %v46
    %v49 = vmul.f32 %v40, %v47
    %v50 = vmul.f32 %v41, %v47
    %51 = vst [vmem:[#allocation5] sm:$0xff] %v49
    %52 = vst [vmem:[#allocation5 + $0x8] sm:$0xff] %v50
    // Predicated region
    $region14: #{tpu_custom_call.1} parent=1 // pred_check
      _
    $region15: #{tpu_custom_call.1} parent=1 // pred_check_branch
      %54 = sbr.rel (0) target = $region17
    $region16: #{tpu_custom_call.1} parent=1 // pred_region
      %s56 = ssub.s32 256, 256
      %57 = vsyncadd [#allocation4], %s56
      %s58 = sshll.u32 [#allocation5], 4
      %s59 = int_to_ptr.vmem [resolvable:$true] %s58
      %64 = dma.vmem_to_hbm [thread:$0]  %s59, 256, %s2, [#allocation4], 128, 128, 8
    $region17: #{tpu_custom_call.1} parent=1 // pred_fallthru
      _
    // Predicated region
    $region18: #{tpu_custom_call.1} parent=1 // pred_check
      _
    $region19: #{tpu_custom_call.1} parent=1 // pred_check_branch
      %66 = sbr.rel (0) target = $region21
    $region20: #{tpu_custom_call.1} parent=1 // pred_region
      %67 = dma.done [#allocation4], 256
    $region21: #{tpu_custom_call.1} parent=1 // pred_fallthru
      _
    %68 = vsyncpa [#allocation3], 1
    %69 = vsyncpa [#allocation4], 1

</llo_original>
